<compile_context>
chip_gen: v6e
topology: v6e:2x2x1
jax: 0.10.0
libtpu: 0.0.40
codegen_flags: <defaults>
</compile_context>

<pallas_src>
import functools

import jax
import jax.numpy as jnp
from jax import lax
from jax.experimental import pallas as pl
from jax.experimental.pallas import tpu as pltpu

K = 4              # GeometricUnit.k
LEAKY_SLOPE = 0.1  # nn.LeakyReLU(0.1)
BN_EPS = 1e-5      # nn.BatchNorm1d default eps
LANE = 128
SUBLANE = 8


def _pick_tile(n, pref):
    """Largest power-of-two multiple of 128 that divides n and is <= pref, else n."""
    best, m = 0, LANE
    while m <= min(n, pref):
        if n % m == 0:
            best = m
        m *= 2
    return best if best else n


# ----------------------------------------------------------------------------
# Kernel A: bknn — streaming VPU pairwise squared distance + running top-4
# ----------------------------------------------------------------------------
def _knn_kernel(xq_ref, xc_ref, idx_ref, *, n, k, sb, tq):
    # xq_ref : (2, TQ)  query coords, point index on lanes.
    # xc_ref : (N, 2)   candidate coords, point index on sublanes.
    # idx_ref: (K, TQ)  int32, lane-dense (neighbour slot, query point).
    xq = xq_ref[...].astype(jnp.float32)
    q0 = xq[0:1, :]                       # (1, TQ)
    q1 = xq[1:2, :]

    num_blocks = n // sb

    def insert_block(blk, carry):
        topv, topi = carry
        off = pl.multiple_of(blk * sb, sb)
        c = xc_ref[pl.ds(off, sb), :].astype(jnp.float32)      # (SB, 2)
        d0 = q0 - c[:, 0:1]                                    # (SB, TQ)
        d1 = q1 - c[:, 1:2]
        cv = d0 * d0 + d1 * d1          # squared distance, min semantics (no negation)
        ci = lax.broadcasted_iota(jnp.int32, (sb, tq), 0) + blk * sb

        # capacity-4 online insertion (values ascending); indices updated with the
        # same compare mask.  Strict '<' keeps earlier (lower index) entries on ties.
        topv, topi = list(topv), list(topi)
        for t in range(k):
            take = cv < topv[t]
            nv = jnp.where(take, cv, topv[t])
            ni = jnp.where(take, ci, topi[t])
            cv = jnp.where(take, topv[t], cv)
            ci = jnp.where(take, topi[t], ci)
            topv[t] = nv
            topi[t] = ni
        return tuple(topv), tuple(topi)

    init_v = tuple(jnp.full((sb, tq), jnp.inf, jnp.float32) for _ in range(k))
    init_i = tuple(jnp.full((sb, tq), n, jnp.int32) for _ in range(k))
    topv, topi = lax.fori_loop(0, num_blocks, insert_block, (init_v, init_i))

    # Final merge of the 8 per-sublane top-4 lists (tiny: (K*SB, TQ)).
    allv = jnp.concatenate(topv, axis=0)                       # (K*SB, TQ)
    alli = jnp.concatenate(topi, axis=0)
    for t in range(k):
        m = jnp.min(allv, axis=0, keepdims=True)               # (1, TQ)
        sel = jnp.min(jnp.where(allv == m, alli, n), axis=0, keepdims=True)
        idx_ref[t:t + 1, :] = sel                              # lane-dense row store
        allv = jnp.where(alli == sel, jnp.inf, allv)


def bknn_pallas(x_row, x_col, k):
    B, _, N = x_row.shape
    tq = _pick_tile(N, 256)
    sb = SUBLANE if N % SUBLANE == 0 else N
    kernel = functools.partial(_knn_kernel, n=N, k=k, sb=sb, tq=tq)
    return pl.pallas_call(
        kernel,
        out_shape=jax.ShapeDtypeStruct((B, k, N), jnp.int32),
        grid=(B, N // tq),
        in_specs=[pl.BlockSpec((None, 2, tq), lambda b, q: (b, 0, q)),
                  # NOTE: kept as an explicit (B, N, 2) input (see header comment).
                  pl.BlockSpec((None, N, 2), lambda b, q: (b, 0, 0))],
        out_specs=pl.BlockSpec((None, k, tq), lambda b, q: (b, 0, q)),
        compiler_params=pltpu.CompilerParams(
            dimension_semantics=("parallel", "parallel")),
    )(x_row, x_col)


# ----------------------------------------------------------------------------
# Kernel B1: GeometricUnit('Laplacian') tail — Linear(3,3) + BN1 + LeakyReLU + residual
# ----------------------------------------------------------------------------
def _geom_unit_kernel(xyz_ref, nmean_ref, wt_ref, bt_ref, g1_ref, b1_ref,
                      lap_ref, *, nb):
    xyz = xyz_ref[...]                                   # (B, 3, TN)
    lap = xyz - nmean_ref[...]                           # Laplacian feature

    wt = wt_ref[...]                                     # (3, 3) [out, in]
    trans = (wt[:, 0:1][None] * lap[:, 0:1, :] +
             wt[:, 1:2][None] * lap[:, 1:2, :] +
             wt[:, 2:3][None] * lap[:, 2:3, :] +
             bt_ref[...][None])                          # (B, 3, TN)

    # BatchNorm1d(npoints), training-mode batch stats: per-point over (B, 3);
    # per-lane, so it tiles trivially over N.
    cnt = float(nb * 3)
    mu = jnp.sum(jnp.sum(trans, axis=1, keepdims=True), axis=0, keepdims=True) / cnt
    d = trans - mu
    var = jnp.sum(jnp.sum(d * d, axis=1, keepdims=True), axis=0, keepdims=True) / cnt
    t = d * lax.rsqrt(var + BN_EPS) * g1_ref[...][None] + b1_ref[...][None]
    t = jnp.where(t >= 0, t, LEAKY_SLOPE * t)            # LeakyReLU(0.1)

    lap_ref[...] = xyz + t                               # GeometricUnit output, channels-first


# ----------------------------------------------------------------------------
# Kernel B2: fc Linear(3,F) on the MXU + folded BN2 + LeakyReLU + residual add
# ----------------------------------------------------------------------------
def _fc_bn_kernel(lap_ref, feat_ref, wfc_ref, scale_ref, bias_ref, out_ref):
    # lap_ref : (8, TN)  lapfeat zero-padded to 8 rows (sublane-native contraction)
    # wfc_ref : (F, 8)   fc weight zero-padded; bias dropped (cancelled by BN2 mean)
    a = jnp.dot(wfc_ref[...], lap_ref[...],
                preferred_element_type=jnp.float32)       # (F, TN)  — MXU
    a = a * scale_ref[...] + bias_ref[...]                # BN2 (training batch stats) folded
    a = jnp.where(a >= 0, a, LEAKY_SLOPE * a)             # LeakyReLU(0.1)
    out_ref[...] = a + feat_ref[...]                      # torch quirk: elementwise (F == N)


# ----------------------------------------------------------------------------
# Wrapper
# ----------------------------------------------------------------------------
def laplacian_extractor_forward(xyz, feat, params):
    B, C, N = xyz.shape
    assert C == 3
    Bf, Nf, F = feat.shape
    assert Bf == B and Nf == N
    assert F == N, "original torch `allfeat + feat` only runs when nfeat == npoints"
    assert N >= K

    # ---- Kernel A: bknn on the first two coordinate channels ----
    x_row = xyz[:, 0:2, :]                                # (B, 2, N)
    x_col = jnp.swapaxes(x_row, 1, 2)                     # (B, N, 2)  (tiny)
    idx = bknn_pallas(x_row, x_col, K)                    # (B, K, N) int32

    # ---- glue: exact torch .view-scramble neighbour gather (row orientation) ----
    # torch: localXYZ = xyz[b][:, flatten(idx_torch[b])]; localXYZ.view(N, K, 3).mean(1)
    # idx[b, k, n] == idx_torch[b, n, k]  ->  flatten order = n-major, k-minor.
    idx_flat = jnp.swapaxes(idx, 1, 2).reshape(B, N * K)              # (B, N*K)
    xyz_rows = jnp.swapaxes(xyz, 1, 2)                                # (B, N, 3)
    rows = jnp.take_along_axis(xyz_rows, idx_flat[:, :, None], axis=1)   # (B, N*K, 3)
    gathered = jnp.swapaxes(rows, 1, 2)                               # (B, 3, N*K)
    local = gathered.reshape(B, N, K, 3)          # raw row-major reinterpret (exact scramble)
    nmean_cf = jnp.transpose(jnp.mean(local, axis=2), (0, 2, 1))      # (B, 3, N)
    # TODO(synk): for production N, replace this XLA gather with a Pallas
    # scalar-prefetch / DMA gather kernel (same scramble arithmetic).

    # ---- Kernel B1: lapfeat (B, 3, N), N-tiled ----
    tn1 = _pick_tile(N, 512)
    lap3 = pl.pallas_call(
        functools.partial(_geom_unit_kernel, nb=B),
        out_shape=jax.ShapeDtypeStruct((B, 3, N), jnp.float32),
        grid=(N // tn1,),
        in_specs=[pl.BlockSpec((B, 3, tn1), lambda q: (0, 0, q)),
                  pl.BlockSpec((B, 3, tn1), lambda q: (0, 0, q)),
                  pl.BlockSpec((3, 3), lambda q: (0, 0)),
                  pl.BlockSpec((3, 1), lambda q: (0, 0)),
                  pl.BlockSpec((1, tn1), lambda q: (0, q)),
                  pl.BlockSpec((1, tn1), lambda q: (0, q))],
        out_specs=pl.BlockSpec((B, 3, tn1), lambda q: (0, 0, q)),
        compiler_params=pltpu.CompilerParams(
            dimension_semantics=("parallel",)),
    )(xyz, nmean_cf, params["wt"], params["bt"], params["g1"], params["b1"])

    # ---- BN2(nfeat) training-mode stats from centred 3x3 moments of lapfeat ----
    # allfeat = wfc @ lapfeat (+bfc):  mean_f = w_f.m1 (+bfc_f),
    # var_f = w_f^T Cov_{B,N}(lapfeat) w_f (biased).  bfc cancels exactly against
    # the batch-mean subtraction, so the fc bias never enters the kernels.
    wfc = params["wfc"]                                    # (F, 3)
    m1 = jnp.mean(lap3, axis=(0, 2))                       # (3,)
    cen = lap3 - m1[None, :, None]
    cov = jnp.einsum("bin,bjn->ij", cen, cen) / float(B * N)       # (3, 3)
    mean2 = wfc @ m1                                       # (F,)
    var2 = jnp.maximum(jnp.einsum("fi,ij,fj->f", wfc, cov, wfc), 0.0)
    inv2 = lax.rsqrt(var2 + BN_EPS)
    scale2 = params["g2"] * inv2[:, None]                  # (F, 1): gamma / sigma
    bias2 = params["b2"] - mean2[:, None] * scale2         # (F, 1): beta - gamma*mu/sigma

    # Zero-pad the depth-3 contraction to a sublane-native 8 for the MXU matmul.
    lap8 = jnp.concatenate([lap3, jnp.zeros((B, 5, N), jnp.float32)], axis=1)   # (B, 8, N)
    wfc_pad = jnp.concatenate([wfc, jnp.zeros((F, 5), jnp.float32)], axis=1)    # (F, 8)

    # ---- Kernel B2: fc (MXU) + folded BN2 + LeakyReLU + residual, (B, N)-tiled ----
    tn2 = _pick_tile(N, 512)
    out = pl.pallas_call(
        _fc_bn_kernel,
        out_shape=jax.ShapeDtypeStruct((B, F, N), jnp.float32),
        grid=(B, N // tn2),
        in_specs=[pl.BlockSpec((None, 8, tn2), lambda b, q: (b, 0, q)),
                  pl.BlockSpec((None, N, tn2), lambda b, q: (b, 0, q)),
                  pl.BlockSpec((F, 8), lambda b, q: (0, 0)),
                  pl.BlockSpec((F, 1), lambda b, q: (0, 0)),
                  pl.BlockSpec((F, 1), lambda b, q: (0, 0))],
        out_specs=pl.BlockSpec((None, F, tn2), lambda b, q: (b, 0, q)),
        compiler_params=pltpu.CompilerParams(
            dimension_semantics=("parallel", "parallel"),
            vmem_limit_bytes=48 * 1024 * 1024),
    )(lap8, feat, wfc_pad, scale2, bias2)
    return out


def init_params(key, npoints, nfeat):
    # Deterministic synthetic weights (shapes from the module __init__),
    # stored in the layouts the channels-first kernels consume.
    ks = jax.random.split(key, 4)
    wt = jax.random.normal(ks[0], (3, 3), jnp.float32) * 0.5           # transform.weight [out,in]
    bt = (jax.random.normal(ks[1], (3,), jnp.float32) * 0.1).reshape(3, 1)
    g1 = jnp.ones((1, npoints), jnp.float32)                           # BatchNorm1d(npoints) gamma
    b1 = jnp.zeros((1, npoints), jnp.float32)                          # beta
    # TODO(synk): `self.fc` is used in forward but never defined in __init__;
    #             assumed to be nn.Linear(3, nfeat).
    wfc = jax.random.normal(ks[2], (nfeat, 3), jnp.float32) * 0.5      # fc.weight [out,in]
    # fc bias kept for module fidelity only — it is exactly cancelled by the
    # training-mode BatchNorm1d(nfeat) mean subtraction, so it is never used.
    bfc = (jax.random.normal(ks[3], (nfeat,), jnp.float32) * 0.1).reshape(nfeat, 1)
    g2 = jnp.ones((nfeat, 1), jnp.float32)                             # BatchNorm1d(nfeat) gamma
    b2 = jnp.zeros((nfeat, 1), jnp.float32)                            # beta
    return dict(wt=wt, bt=bt, g1=g1, b1=b1, wfc=wfc, bfc=bfc, g2=g2, b2=b2)


if __name__ == "__main__":
    # nfeat == npoints is required by the original torch add (see layout comment)
    B, N, F = 2, 16, 16
    key = jax.random.PRNGKey(0)
    k1, k2, k3 = jax.random.split(key, 3)
    xyz = jax.random.normal(k1, (B, 3, N), jnp.float32)      # channels-first points
    feat = jax.random.normal(k2, (B, N, F), jnp.float32)
    params = init_params(k3, N, F)

    out = laplacian_extractor_forward(xyz, feat, params)
    out = jax.block_until_ready(out)
    assert out.shape == (B, F, N) and out.dtype == jnp.float32
    print("KERNEL_OK")
</pallas_src>

<mosaic_0001>
module attributes {stable_mosaic.version = 11 : i64} {
  func.func @_knn_kernel(%arg0: i32, %arg1: i32, %arg2: memref<1x2x16xf32, #tpu.memory_space<vmem>>, %arg3: memref<1x16x2xf32, #tpu.memory_space<vmem>>, %arg4: memref<1x4x16xi32, #tpu.memory_space<vmem>>) attributes {dimension_semantics = [#tpu.dimension_semantics<parallel>, #tpu.dimension_semantics<parallel>], iteration_bounds = array<i64: 2, 1>, scalar_prefetch = 0 : i64, scratch_operands = 0 : i64, tpu.core_type = #tpu.core_type<tc>, window_params = [{transform_indices = @transform_0, window_bounds = array<i64: 1, 2, 16>}, {transform_indices = @transform_1, window_bounds = array<i64: 1, 16, 2>}, {transform_indices = @transform_2, window_bounds = array<i64: 1, 4, 16>}]} {
    %c0 = arith.constant 0 : index
    %c0_0 = arith.constant 0 : index
    %c0_1 = arith.constant 0 : index
    %0 = vector.load %arg2[%c0, %c0_0, %c0_1] : memref<1x2x16xf32, #tpu.memory_space<vmem>>, vector<1x2x16xf32>
    %1 = vector.shape_cast %0 : vector<1x2x16xf32> to vector<2x16xf32>
    %2 = vector.extract_strided_slice %1 {offsets = [0, 0], sizes = [1, 16], strides = [1, 1]} : vector<2x16xf32> to vector<1x16xf32>
    %3 = vector.extract_strided_slice %1 {offsets = [1, 0], sizes = [1, 16], strides = [1, 1]} : vector<2x16xf32> to vector<1x16xf32>
    %cst = arith.constant 0x7F800000 : f32
    %4 = vector.broadcast %cst : f32 to vector<8x16xf32>
    %cst_2 = arith.constant 0x7F800000 : f32
    %5 = vector.broadcast %cst_2 : f32 to vector<8x16xf32>
    %cst_3 = arith.constant 0x7F800000 : f32
    %6 = vector.broadcast %cst_3 : f32 to vector<8x16xf32>
    %cst_4 = arith.constant 0x7F800000 : f32
    %7 = vector.broadcast %cst_4 : f32 to vector<8x16xf32>
    %c16_i32 = arith.constant 16 : i32
    %8 = vector.broadcast %c16_i32 : i32 to vector<8x16xi32>
    %c16_i32_5 = arith.constant 16 : i32
    %9 = vector.broadcast %c16_i32_5 : i32 to vector<8x16xi32>
    %c16_i32_6 = arith.constant 16 : i32
    %10 = vector.broadcast %c16_i32_6 : i32 to vector<8x16xi32>
    %c16_i32_7 = arith.constant 16 : i32
    %11 = vector.broadcast %c16_i32_7 : i32 to vector<8x16xi32>
    %c0_i32 = arith.constant 0 : i32
    %c2_i32 = arith.constant 2 : i32
    %12 = arith.addi %c0_i32, %c2_i32 : i32
    %c1_i32 = arith.constant 1 : i32
    %13:8 = scf.for %arg5 = %c0_i32 to %12 step %c1_i32 iter_args(%arg6 = %4, %arg7 = %5, %arg8 = %6, %arg9 = %7, %arg10 = %8, %arg11 = %9, %arg12 = %10, %arg13 = %11) -> (vector<8x16xf32>, vector<8x16xf32>, vector<8x16xf32>, vector<8x16xf32>, vector<8x16xi32>, vector<8x16xi32>, vector<8x16xi32>, vector<8x16xi32>)  : i32 {
      %c8_i32 = arith.constant 8 : i32
      %72 = arith.muli %arg5, %c8_i32 : i32
      %73 = tpu.assume_multiple %72, 8 : i32
      %c0_33 = arith.constant 0 : index
      %74 = arith.index_cast %73 : i32 to index
      %c0_34 = arith.constant 0 : index
      %75 = vector.load %arg3[%c0_33, %74, %c0_34] : memref<1x16x2xf32, #tpu.memory_space<vmem>>, vector<1x8x2xf32>
      %76 = vector.shape_cast %75 : vector<1x8x2xf32> to vector<8x2xf32>
      %77 = vector.extract_strided_slice %76 {offsets = [0, 0], sizes = [8, 1], strides = [1, 1]} : vector<8x2xf32> to vector<8x1xf32>
      %78 = vector.broadcast %2 : vector<1x16xf32> to vector<8x16xf32>
      %79 = vector.broadcast %77 : vector<8x1xf32> to vector<8x16xf32>
      %80 = arith.subf %78, %79 : vector<8x16xf32>
      %81 = vector.extract_strided_slice %76 {offsets = [0, 1], sizes = [8, 1], strides = [1, 1]} : vector<8x2xf32> to vector<8x1xf32>
      %82 = vector.broadcast %3 : vector<1x16xf32> to vector<8x16xf32>
      %83 = vector.broadcast %81 : vector<8x1xf32> to vector<8x16xf32>
      %84 = arith.subf %82, %83 : vector<8x16xf32>
      %85 = arith.mulf %80, %80 : vector<8x16xf32>
      %86 = arith.mulf %84, %84 : vector<8x16xf32>
      %87 = arith.addf %85, %86 : vector<8x16xf32>
      %88 = tpu.iota {dimensions = array<i32: 0>} : vector<8x16xi32>
      %c8_i32_35 = arith.constant 8 : i32
      %89 = arith.muli %arg5, %c8_i32_35 : i32
      %90 = vector.broadcast %89 : i32 to vector<8x16xi32>
      %91 = arith.addi %88, %90 : vector<8x16xi32>
      %92 = arith.cmpf olt, %87, %arg6 : vector<8x16xf32>
      %93 = arith.select %92, %87, %arg6 : vector<8x16xi1>, vector<8x16xf32>
      %94 = arith.select %92, %91, %arg10 : vector<8x16xi1>, vector<8x16xi32>
      %95 = arith.select %92, %arg6, %87 : vector<8x16xi1>, vector<8x16xf32>
      %96 = arith.select %92, %arg10, %91 : vector<8x16xi1>, vector<8x16xi32>
      %97 = arith.cmpf olt, %95, %arg7 : vector<8x16xf32>
      %98 = arith.select %97, %95, %arg7 : vector<8x16xi1>, vector<8x16xf32>
      %99 = arith.select %97, %96, %arg11 : vector<8x16xi1>, vector<8x16xi32>
      %100 = arith.select %97, %arg7, %95 : vector<8x16xi1>, vector<8x16xf32>
      %101 = arith.select %97, %arg11, %96 : vector<8x16xi1>, vector<8x16xi32>
      %102 = arith.cmpf olt, %100, %arg8 : vector<8x16xf32>
      %103 = arith.select %102, %100, %arg8 : vector<8x16xi1>, vector<8x16xf32>
      %104 = arith.select %102, %101, %arg12 : vector<8x16xi1>, vector<8x16xi32>
      %105 = arith.select %102, %arg8, %100 : vector<8x16xi1>, vector<8x16xf32>
      %106 = arith.select %102, %arg12, %101 : vector<8x16xi1>, vector<8x16xi32>
      %107 = arith.cmpf olt, %105, %arg9 : vector<8x16xf32>
      %108 = arith.select %107, %105, %arg9 : vector<8x16xi1>, vector<8x16xf32>
      %109 = arith.select %107, %106, %arg13 : vector<8x16xi1>, vector<8x16xi32>
      scf.yield %93, %98, %103, %108, %94, %99, %104, %109 : vector<8x16xf32>, vector<8x16xf32>, vector<8x16xf32>, vector<8x16xf32>, vector<8x16xi32>, vector<8x16xi32>, vector<8x16xi32>, vector<8x16xi32>
    }
    %c2_i32_8 = arith.constant 2 : i32
    %14 = tpu.concatenate %13#0, %13#1, %13#2, %13#3 in 0 : vector<8x16xf32>, vector<8x16xf32>, vector<8x16xf32>, vector<8x16xf32> -> vector<32x16xf32>
    %15 = tpu.concatenate %13#4, %13#5, %13#6, %13#7 in 0 : vector<8x16xi32>, vector<8x16xi32>, vector<8x16xi32>, vector<8x16xi32> -> vector<32x16xi32>
    %cst_9 = arith.constant dense<0x7F800000> : vector<16xf32>
    %16 = vector.multi_reduction <minimumf>, %14, %cst_9 [0] : vector<32x16xf32> to vector<16xf32>
    %17 = vector.shape_cast %16 : vector<16xf32> to vector<1x16xf32>
    %18 = vector.broadcast %17 : vector<1x16xf32> to vector<32x16xf32>
    %19 = arith.cmpf oeq, %14, %18 : vector<32x16xf32>
    %c16_i32_10 = arith.constant 16 : i32
    %20 = vector.broadcast %c16_i32_10 : i32 to vector<32x16xi32>
    %21 = arith.select %19, %15, %20 : vector<32x16xi1>, vector<32x16xi32>
    %cst_11 = arith.constant dense<2147483647> : vector<16xi32>
    %22 = vector.multi_reduction <minsi>, %21, %cst_11 [0] : vector<32x16xi32> to vector<16xi32>
    %23 = vector.shape_cast %22 : vector<16xi32> to vector<1x16xi32>
    %c0_12 = arith.constant 0 : index
    %c0_13 = arith.constant 0 : index
    %c0_14 = arith.constant 0 : index
    %24 = vector.load %arg4[%c0_12, %c0_13, %c0_14] : memref<1x4x16xi32, #tpu.memory_space<vmem>>, vector<1x1x16xi32>
    %25 = vector.shape_cast %24 : vector<1x1x16xi32> to vector<1x16xi32>
    %26 = vector.shape_cast %23 : vector<1x16xi32> to vector<1x1x16xi32>
    tpu.vector_store %arg4[%c0_12, %c0_13, %c0_14], %26 {strides = array<i32>} : memref<1x4x16xi32, #tpu.memory_space<vmem>>, vector<1x1x16xi32>,
    %27 = vector.broadcast %23 : vector<1x16xi32> to vector<32x16xi32>
    %28 = arith.cmpi eq, %15, %27 : vector<32x16xi32>
    %cst_15 = arith.constant 0x7F800000 : f32
    %29 = vector.broadcast %cst_15 : f32 to vector<32x16xf32>
    %30 = arith.select %28, %29, %14 : vector<32x16xi1>, vector<32x16xf32>
    %cst_16 = arith.constant dense<0x7F800000> : vector<16xf32>
    %31 = vector.multi_reduction <minimumf>, %30, %cst_16 [0] : vector<32x16xf32> to vector<16xf32>
    %32 = vector.shape_cast %31 : vector<16xf32> to vector<1x16xf32>
    %33 = vector.broadcast %32 : vector<1x16xf32> to vector<32x16xf32>
    %34 = arith.cmpf oeq, %30, %33 : vector<32x16xf32>
    %c16_i32_17 = arith.constant 16 : i32
    %35 = vector.broadcast %c16_i32_17 : i32 to vector<32x16xi32>
    %36 = arith.select %34, %15, %35 : vector<32x16xi1>, vector<32x16xi32>
    %cst_18 = arith.constant dense<2147483647> : vector<16xi32>
    %37 = vector.multi_reduction <minsi>, %36, %cst_18 [0] : vector<32x16xi32> to vector<16xi32>
    %38 = vector.shape_cast %37 : vector<16xi32> to vector<1x16xi32>
    %c0_19 = arith.constant 0 : index
    %c1 = arith.constant 1 : index
    %c0_20 = arith.constant 0 : index
    %39 = vector.load %arg4[%c0_19, %c1, %c0_20] : memref<1x4x16xi32, #tpu.memory_space<vmem>>, vector<1x1x16xi32>
    %40 = vector.shape_cast %39 : vector<1x1x16xi32> to vector<1x16xi32>
    %41 = vector.shape_cast %38 : vector<1x16xi32> to vector<1x1x16xi32>
    tpu.vector_store %arg4[%c0_19, %c1, %c0_20], %41 {strides = array<i32>} : memref<1x4x16xi32, #tpu.memory_space<vmem>>, vector<1x1x16xi32>,
    %42 = vector.broadcast %38 : vector<1x16xi32> to vector<32x16xi32>
    %43 = arith.cmpi eq, %15, %42 : vector<32x16xi32>
    %cst_21 = arith.constant 0x7F800000 : f32
    %44 = vector.broadcast %cst_21 : f32 to vector<32x16xf32>
    %45 = arith.select %43, %44, %30 : vector<32x16xi1>, vector<32x16xf32>
    %cst_22 = arith.constant dense<0x7F800000> : vector<16xf32>
    %46 = vector.multi_reduction <minimumf>, %45, %cst_22 [0] : vector<32x16xf32> to vector<16xf32>
    %47 = vector.shape_cast %46 : vector<16xf32> to vector<1x16xf32>
    %48 = vector.broadcast %47 : vector<1x16xf32> to vector<32x16xf32>
    %49 = arith.cmpf oeq, %45, %48 : vector<32x16xf32>
    %c16_i32_23 = arith.constant 16 : i32
    %50 = vector.broadcast %c16_i32_23 : i32 to vector<32x16xi32>
    %51 = arith.select %49, %15, %50 : vector<32x16xi1>, vector<32x16xi32>
    %cst_24 = arith.constant dense<2147483647> : vector<16xi32>
    %52 = vector.multi_reduction <minsi>, %51, %cst_24 [0] : vector<32x16xi32> to vector<16xi32>
    %53 = vector.shape_cast %52 : vector<16xi32> to vector<1x16xi32>
    %c0_25 = arith.constant 0 : index
    %c2 = arith.constant 2 : index
    %c0_26 = arith.constant 0 : index
    %54 = vector.load %arg4[%c0_25, %c2, %c0_26] : memref<1x4x16xi32, #tpu.memory_space<vmem>>, vector<1x1x16xi32>
    %55 = vector.shape_cast %54 : vector<1x1x16xi32> to vector<1x16xi32>
    %56 = vector.shape_cast %53 : vector<1x16xi32> to vector<1x1x16xi32>
    tpu.vector_store %arg4[%c0_25, %c2, %c0_26], %56 {strides = array<i32>} : memref<1x4x16xi32, #tpu.memory_space<vmem>>, vector<1x1x16xi32>,
    %57 = vector.broadcast %53 : vector<1x16xi32> to vector<32x16xi32>
    %58 = arith.cmpi eq, %15, %57 : vector<32x16xi32>
    %cst_27 = arith.constant 0x7F800000 : f32
    %59 = vector.broadcast %cst_27 : f32 to vector<32x16xf32>
    %60 = arith.select %58, %59, %45 : vector<32x16xi1>, vector<32x16xf32>
    %cst_28 = arith.constant dense<0x7F800000> : vector<16xf32>
    %61 = vector.multi_reduction <minimumf>, %60, %cst_28 [0] : vector<32x16xf32> to vector<16xf32>
    %62 = vector.shape_cast %61 : vector<16xf32> to vector<1x16xf32>
    %63 = vector.broadcast %62 : vector<1x16xf32> to vector<32x16xf32>
    %64 = arith.cmpf oeq, %60, %63 : vector<32x16xf32>
    %c16_i32_29 = arith.constant 16 : i32
    %65 = vector.broadcast %c16_i32_29 : i32 to vector<32x16xi32>
    %66 = arith.select %64, %15, %65 : vector<32x16xi1>, vector<32x16xi32>
    %cst_30 = arith.constant dense<2147483647> : vector<16xi32>
    %67 = vector.multi_reduction <minsi>, %66, %cst_30 [0] : vector<32x16xi32> to vector<16xi32>
    %68 = vector.shape_cast %67 : vector<16xi32> to vector<1x16xi32>
    %c0_31 = arith.constant 0 : index
    %c3 = arith.constant 3 : index
    %c0_32 = arith.constant 0 : index
    %69 = vector.load %arg4[%c0_31, %c3, %c0_32] : memref<1x4x16xi32, #tpu.memory_space<vmem>>, vector<1x1x16xi32>
    %70 = vector.shape_cast %69 : vector<1x1x16xi32> to vector<1x16xi32>
    %71 = vector.shape_cast %68 : vector<1x16xi32> to vector<1x1x16xi32>
    tpu.vector_store %arg4[%c0_31, %c3, %c0_32], %71 {strides = array<i32>} : memref<1x4x16xi32, #tpu.memory_space<vmem>>, vector<1x1x16xi32>,
    return
  }
  func.func @transform_0(%arg0: i32, %arg1: i32) -> (i32, i32, i32) {
    %c0_i32 = arith.constant 0 : i32
    %c0_i32_0 = arith.constant 0 : i32
    return %arg0, %c0_i32, %arg1 : i32, i32, i32
  }
  func.func @transform_1(%arg0: i32, %arg1: i32) -> (i32, i32, i32) {
    %c0_i32 = arith.constant 0 : i32
    %c0_i32_0 = arith.constant 0 : i32
    %c0_i32_1 = arith.constant 0 : i32
    return %arg0, %c0_i32, %c0_i32_0 : i32, i32, i32
  }
  func.func @transform_2(%arg0: i32, %arg1: i32) -> (i32, i32, i32) {
    %c0_i32 = arith.constant 0 : i32
    %c0_i32_0 = arith.constant 0 : i32
    return %arg0, %c0_i32, %arg1 : i32, i32, i32
  }
}

</mosaic_0001>

<llo_original>
// kernel: tpu_custom_call.1
$region0: #{tpu_custom_call.1}
  #allocation0 [shape = 'u32[]', space=smem, size = 0x4, offset = 0x4, fixed_abs, tag = 'smem constant byte address 0x4 - core index']
  #allocation1 [shape = 'u32[144,128]{1,0:T(1,128)}', space=vmem, size = 0x12000, scoped, tag = 'internal scratch']
  %s0 = inlined_call_operand.vmem [shape: f32[2,2,16], index: 0, kind: input, shape index: {}]
  %s1 = inlined_call_operand.vmem [shape: f32[2,16,2], index: 1, kind: input, shape index: {}]
  %s2 = inlined_call_operand.hbm [shape: s32[2,4,16], index: 2, kind: output, shape index: {}]
  %s3 = sld [smem:[#allocation0]]
  $region48: #{tpu_custom_call.1} parent=0
    _
  %s5 = ssub.s32 1, %s3
  %s6 = scalar_select 0, %s5, %s3
  $region1: #{tpu_custom_call.1} parent=0
    #allocation2 [shape = 'u8[4096]{0}', space=vmem, size = 0x1000, scoped, tag = 'output window, operand 0']
    #allocation3 [shape = 's32[2]{0}', space=sflag, size = 0x8, scoped, tag = 'scoped memory for tpu_custom_call.1']
    %7 = vsyncpa [#allocation3], 0
    %s8 = scalar_lea.sflag [#allocation3], 1
    %9 = vsyncpa %s8, 0
    loop: start=0, step=1, limit=4
    $region2: #{tpu_custom_call.1} parent=1 // loop_pre_header
      _
    $region3: #{tpu_custom_call.1} parent=1 // loop_header
      %s11 = sphi 0, %s15
      %p12 = scmp.ge.s32.totalorder %s11, 4
      %s18 = sphi 0, %s30
      %s19 = sphi 0, %s26
      %s20 = sphi 0, %s18
      %s21 = sphi 0, %s19
      %s22 = sphi 0, %s20
      %s23 = sphi 0, %s21
      %s35 = sphi 0, %s37
      %s38 = sphi 0, %s35
      %s39 = sphi 0, %s38
      %s55 = sphi 0, %s39
      %s61 = sphi 0, %s63
      %s64 = sphi 0, %s61
      %s65 = sphi 0, %s64
      %s81 = sphi 0, %s65
      %s89 = sphi 0, %s91
      %s92 = sphi 0, %s89
      %s93 = sphi 0, %s92
      %s109 = sphi 0, %s93
    $region4: #{tpu_custom_call.1} parent=1 // loop_header_branch
      %14 = sbr.rel (%p12) target = $region8
    $region5: #{tpu_custom_call.1} parent=1 // loop_body
      %s16 = ssub.s32 %s11, 1
      %s17 = ssub.s32 %s11, 2
      %s24 = sadd.s32 1, %s19
      %p25 = scmp.ge.s32.totalorder %s24, 1
      %s26 = scalar_select %p25, 0, %s24
      %s27 = sadd.s32 1, %s18
      %s28 = scalar_select %p25, %s27, %s18
      %p29 = scmp.ge.s32.totalorder %s28, 2
      %s30 = scalar_select %p29, 0, %s28
      %s31 = ssub.s32 %s18, %s30
      %s32 = ssub.s32 %s19, %s26
      %s33 = sor.u32 %s31, %s32
      %p34 = scmp.eq.s32.totalorder %s33, 0
      %s36 = sadd.s32 %s35, 1
      %s37 = scalar_select %p34, %s35, %s36
      %p40 = pneg %p34
      %p41 = scmp.eq.s32.totalorder %s11, 1
      %p42 = por %p40, %p41
      %p43 = scmp.ne.s32.totalorder %s35, %s38
      %p44 = scmp.eq.s32.totalorder %s11, 0
      %p45 = por %p43, %p44
      %p46 = scmp.ne.s32.totalorder %s35, %s38
      %p47 = scmp.eq.s32.totalorder %s16, 1
      %p48 = por %p46, %p47
      %p49 = scmp.ne.s32.totalorder %s38, %s39
      %p50 = scmp.eq.s32.totalorder %s16, 0
      %p51 = por %p49, %p50
      %p52 = scmp.ne.s32.totalorder %s38, %s39
      %p53 = scmp.eq.s32.totalorder %s17, 1
      %p54 = por %p52, %p53
      %p56 = scmp.ne.s32.totalorder %s39, %s55
      %p57 = scmp.eq.s32.totalorder %s17, 0
      %p58 = por %p56, %p57
      %s59 = ssub.s32 %s18, %s30
      %p60 = scmp.eq.s32.totalorder %s59, 0
      %s62 = sadd.s32 %s61, 1
      %s63 = scalar_select %p60, %s61, %s62
      %p66 = pneg %p60
      %p67 = scmp.eq.s32.totalorder %s11, 1
      %p68 = por %p66, %p67
      %p69 = scmp.ne.s32.totalorder %s61, %s64
      %p70 = scmp.eq.s32.totalorder %s11, 0
      %p71 = por %p69, %p70
      %p72 = scmp.ne.s32.totalorder %s61, %s64
      %p73 = scmp.eq.s32.totalorder %s16, 1
      %p74 = por %p72, %p73
      %p75 = scmp.ne.s32.totalorder %s64, %s65
      %p76 = scmp.eq.s32.totalorder %s16, 0
      %p77 = por %p75, %p76
      %p78 = scmp.ne.s32.totalorder %s64, %s65
      %p79 = scmp.eq.s32.totalorder %s17, 1
      %p80 = por %p78, %p79
      %p82 = scmp.ne.s32.totalorder %s65, %s81
      %p83 = scmp.eq.s32.totalorder %s17, 0
      %p84 = por %p82, %p83
      %s85 = ssub.s32 %s18, %s30
      %s86 = ssub.s32 %s19, %s26
      %s87 = sor.u32 %s85, %s86
      %p88 = scmp.eq.s32.totalorder %s87, 0
      %s90 = sadd.s32 %s89, 1
      %s91 = scalar_select %p88, %s89, %s90
      %p94 = pneg %p88
      %p95 = scmp.eq.s32.totalorder %s11, 1
      %p96 = por %p94, %p95
      %p97 = scmp.ne.s32.totalorder %s89, %s92
      %p98 = scmp.eq.s32.totalorder %s11, 0
      %p99 = por %p97, %p98
      %p100 = scmp.ne.s32.totalorder %s89, %s92
      %p101 = scmp.eq.s32.totalorder %s16, 1
      %p102 = por %p100, %p101
      %p103 = scmp.ne.s32.totalorder %s92, %s93
      %p104 = scmp.eq.s32.totalorder %s16, 0
      %p105 = por %p103, %p104
      %p106 = scmp.ne.s32.totalorder %s92, %s93
      %p107 = scmp.eq.s32.totalorder %s17, 1
      %p108 = por %p106, %p107
      %p110 = scmp.ne.s32.totalorder %s93, %s109
      %p111 = scmp.eq.s32.totalorder %s17, 0
      %p112 = por %p110, %p111
      %p113 = scmp.le.s32.totalorder 1, %s11
      %p114 = scmp.lt.s32.totalorder %s11, 3
      %p115 = pnand %p113, %p114
      %p116 = pneg %p115
      // Predicated region
      $region9: #{tpu_custom_call.1} parent=5 // pred_check
        _
      $region10: #{tpu_custom_call.1} parent=5 // pred_check_branch
        %118 = sbr.rel (%p115) target = $region12
      $region11: #{tpu_custom_call.1} parent=5 // pred_region
        %s119 = ssub.s32 %s11, 1
      $region12: #{tpu_custom_call.1} parent=5 // pred_fallthru
        _
      %p120 = scmp.lt.s32.totalorder %s11, 2
      // Predicated region
      $region13: #{tpu_custom_call.1} parent=5 // pred_check
        %p121 = pneg %p120
      $region14: #{tpu_custom_call.1} parent=5 // pred_check_branch
        %123 = sbr.rel (%p121) target = $region16
      $region15: #{tpu_custom_call.1} parent=5 // pred_region
        // Predicated region
        $region17: #{tpu_custom_call.1} parent=15 // pred_check
          %p124 = pneg %p45
        $region18: #{tpu_custom_call.1} parent=15 // pred_check_branch
          %126 = sbr.rel (%p124) target = $region20
        $region19: #{tpu_custom_call.1} parent=15 // pred_region
          %p127 = scmp.lt.s32.totalorder %s18, 1
          %s128 = scalar_select %p127, %s18, 1
          %p129 = scmp.lt.s32.totalorder %s19, 0
          %s130 = scalar_select %p129, %s19, 0
          %s131 = sadd.s32 %s130, %s128
          %s132 = smul.addr %s131, 2
          %s133 = scalar_lea.vmem %s0, %s132
        $region20: #{tpu_custom_call.1} parent=15 // pred_fallthru
          _
        // Predicated region
        $region21: #{tpu_custom_call.1} parent=15 // pred_check
          %p134 = pneg %p71
        $region22: #{tpu_custom_call.1} parent=15 // pred_check_branch
          %136 = sbr.rel (%p134) target = $region24
        $region23: #{tpu_custom_call.1} parent=15 // pred_region
          %p137 = scmp.lt.s32.totalorder %s18, 1
          %s138 = scalar_select %p137, %s18, 1
          %s139 = smul.addr %s138, 2
          %s140 = smul.addr %s139, 8
          %s141 = scalar_lea.vmem %s1, %s140
        $region24: #{tpu_custom_call.1} parent=15 // pred_fallthru
          _
      $region16: #{tpu_custom_call.1} parent=5 // pred_fallthru
        _
      %p142 = scmp.le.s32.totalorder 1, %s11
      %p143 = scmp.lt.s32.totalorder %s11, 3
      %p144 = pnand %p142, %p143
      %p145 = pneg %p144
      // Predicated region
      $region25: #{tpu_custom_call.1} parent=5 // pred_check
        _
      $region26: #{tpu_custom_call.1} parent=5 // pred_check_branch
        %147 = sbr.rel (%p144) target = $region28
      $region27: #{tpu_custom_call.1} parent=5 // pred_region
        %s148 = ssub.s32 %s11, 1
        %p149 = scmp.lt.s32.totalorder %s20, 1
        %s150 = scalar_select %p149, %s20, 1
        %p151 = scmp.lt.s32.totalorder %s21, 0
        %s152 = scalar_select %p151, %s21, 0
        %s153 = sadd.s32 %s152, %s150
        %s154 = smul.addr %s153, 2
        %s155 = scalar_lea.vmem %s0, %s154
        %p156 = pneg %p51
        %p157 = pneg %p48
        %p158 = scmp.lt.s32.totalorder %s20, 1
        %s159 = scalar_select %p158, %s20, 1
        %s160 = smul.addr %s159, 2
        %s161 = smul.addr %s160, 8
        %s162 = scalar_lea.vmem %s1, %s161
        %p163 = pneg %p77
        %p164 = pneg %p74
        %p165 = pneg %p105
        %p166 = pneg %p102
        %s167 = sand.u32 %s92, 1
        %s168 = scalar_lea.sflag [#allocation3], %s167
        %s169 = sand.u32 %s92, 1
        %s170 = smul.addr %s169, 4
        %s171 = scalar_lea.vmem [#allocation2], %s170
        %p172 = scmp.lt.s32.totalorder %s20, 1
        %s173 = scalar_select %p172, %s20, 1
        %p174 = scmp.lt.s32.totalorder %s21, 0
        %s175 = scalar_select %p174, %s21, 0
        %s176 = sadd.s32 %s175, %s173
        %s177 = smul.addr %s176, 2
        %s178 = scalar_lea.vmem %s0, %s177
        %p179 = scmp.lt.s32.totalorder %s20, 1
        %s180 = scalar_select %p179, %s20, 1
        %s181 = smul.addr %s180, 2
        %s182 = smul.addr %s181, 8
        %s183 = scalar_lea.vmem %s1, %s182
        %v184 = vld [vmem:[%s178] sm:$0x3]
        loop: start=0, step=1, limit=2
        $region29: #{tpu_custom_call.1} parent=27 // loop_pre_header
          _
        $region30: #{tpu_custom_call.1} parent=27 // loop_header
          %s186 = sphi 0, %s190
          %p187 = scmp.ge.s32.totalorder %s186, 2
          %v191 = vphi inf, %v229
          %v192 = vphi inf, %v234
          %v193 = vphi inf, %v239
          %v194 = vphi inf, %v244
          %v195 = vphi 16, %v230
          %v196 = vphi 16, %v235
          %v197 = vphi 16, %v240
          %v198 = vphi 16, %v245
        $region31: #{tpu_custom_call.1} parent=27 // loop_header_branch
          %189 = sbr.rel (%p187) target = $region35
        $region32: #{tpu_custom_call.1} parent=27 // loop_body
          %s199 = smul.u32 %s186, 8
          %s200 = scalar_lea.vmem %s183, %s199
          %v201 = vld [vmem:[%s200] sm:$0xff]
          %v202 = vlaneseq
          %v203 = vshrl.u32 %v202, 7
          %v204 = vsub.s32 0, %v203
          %v205 = vrot.slane %v184, %v204
          %207 = vset.pattern.permute.xlu0 0
          %208 = vperm.xlu0 %207, %v201
          %v209 = vpop.permute.xlu0 %208
          %v211 = vsub.f32 %v205, %v209
          %v212 = vlaneseq
          %v213 = vshrl.u32 %v212, 7
          %v214 = vsub.s32 1, %v213
          %v215 = vrot.slane %v184, %v214
          %216 = vset.pattern.permute.xlu0 1
          %217 = vperm.xlu0 %216, %v201
          %v218 = vpop.permute.xlu0 %217
          %v220 = vsub.f32 %v215, %v218
          %v221 = vmul.f32 %v211, %v211
          %v222 = vmul.f32 %v220, %v220
          %v223 = vadd.f32 %v221, %v222
          %v224 = vlaneseq
          %v225 = vshrl.u32 %v224, 7
          %v226 = vstv %s199
          %v227 = vadd.s32 %v225, %v226
          %vm228 = vcmp.lt.f32.partialorder %v223, %v191
          %v229 = vsel %vm228, %v223, %v191
          %v230 = vsel %vm228, %v227, %v195
          %v231 = vsel %vm228, %v191, %v223
          %v232 = vsel %vm228, %v195, %v227
          %vm233 = vcmp.lt.f32.partialorder %v231, %v192
          %v234 = vsel %vm233, %v231, %v192
          %v235 = vsel %vm233, %v232, %v196
          %v236 = vsel %vm233, %v192, %v231
          %v237 = vsel %vm233, %v196, %v232
          %vm238 = vcmp.lt.f32.partialorder %v236, %v193
          %v239 = vsel %vm238, %v236, %v193
          %v240 = vsel %vm238, %v237, %v197
          %v241 = vsel %vm238, %v193, %v236
          %v242 = vsel %vm238, %v197, %v237
          %vm243 = vcmp.lt.f32.partialorder %v241, %v194
          %v244 = vsel %vm243, %v241, %v194
          %v245 = vsel %vm243, %v242, %v198
        $region33: #{tpu_custom_call.1} parent=27 // loop_footer
          %s190 = sadd.s32 1, %s186
        $region34: #{tpu_custom_call.1} parent=27 // loop_footer_branch
          %185 = sbr.rel target = $region30
        $region35: #{tpu_custom_call.1} parent=27 // loop_exit
          _
        %vm246 = vcmask 130048
        %v247 = vsel %vm246, %v191, inf
        %v248 = vsel %vm246, %v192, inf
        %v249 = vsel %vm246, %v193, inf
        %v250 = vsel %vm246, %v194, inf
        %v251 = vmin.f32 %v247, %v248
        %v252 = vmin.f32 %v249, %v250
        %v253 = vmin.f32 %v251, %v252
        %v254 = vrot.slane %v253, 4
        %v255 = vmin.f32 %v253, %v254
        %v256 = vrot.slane %v255, 2
        %v257 = vmin.f32 %v255, %v256
        %v258 = vrot.slane %v257, 1
        %v259 = vmin.f32 %v257, %v258
        %vm260 = vcmp.eq.f32.partialorder %v191, %v259
        %vm261 = vcmp.eq.f32.partialorder %v192, %v259
        %vm262 = vcmp.eq.f32.partialorder %v193, %v259
        %vm263 = vcmp.eq.f32.partialorder %v194, %v259
        %v264 = vsel %vm260, %v195, 16
        %v265 = vsel %vm261, %v196, 16
        %v266 = vsel %vm262, %v197, 16
        %v267 = vsel %vm263, %v198, 16
        %v268 = vsel %vm246, %v264, 2147483647
        %v269 = vsel %vm246, %v265, 2147483647
        %v270 = vsel %vm246, %v266, 2147483647
        %v271 = vsel %vm246, %v267, 2147483647
        %vm272 = vcmp.lt.s32.totalorder %v268, %v269
        %v273 = vsel %vm272, %v268, %v269
        %vm274 = vcmp.lt.s32.totalorder %v270, %v271
        %v275 = vsel %vm274, %v270, %v271
        %vm276 = vcmp.lt.s32.totalorder %v273, %v275
        %v277 = vsel %vm276, %v273, %v275
        %v278 = vrot.slane %v277, 4
        %vm279 = vcmp.lt.s32.totalorder %v277, %v278
        %v280 = vsel %vm279, %v277, %v278
        %v281 = vrot.slane %v280, 2
        %vm282 = vcmp.lt.s32.totalorder %v280, %v281
        %v283 = vsel %vm282, %v280, %v281
        %v284 = vrot.slane %v283, 1
        %vm285 = vcmp.lt.s32.totalorder %v283, %v284
        %v286 = vsel %vm285, %v283, %v284
        %vm287 = vcmask 122880
        %288 = vst.msk [vmem:[%s171] sm:$0x1] %vm287, %v286
        %vm289 = vcmp.eq.s32.totalorder %v195, %v286
        %vm290 = vcmp.eq.s32.totalorder %v196, %v286
        %vm291 = vcmp.eq.s32.totalorder %v197, %v286
        %vm292 = vcmp.eq.s32.totalorder %v198, %v286
        %v293 = vsel %vm289, inf, %v191
        %v294 = vsel %vm290, inf, %v192
        %v295 = vsel %vm291, inf, %v193
        %v296 = vsel %vm292, inf, %v194
        %v297 = vsel %vm246, %v293, inf
        %v298 = vsel %vm246, %v294, inf
        %v299 = vsel %vm246, %v295, inf
        %v300 = vsel %vm246, %v296, inf
        %v301 = vmin.f32 %v297, %v298
        %v302 = vmin.f32 %v299, %v300
        %v303 = vmin.f32 %v301, %v302
        %v304 = vrot.slane %v303, 4
        %v305 = vmin.f32 %v303, %v304
        %v306 = vrot.slane %v305, 2
        %v307 = vmin.f32 %v305, %v306
        %v308 = vrot.slane %v307, 1
        %v309 = vmin.f32 %v307, %v308
        %vm310 = vcmp.eq.f32.partialorder %v293, %v309
        %vm311 = vcmp.eq.f32.partialorder %v294, %v309
        %vm312 = vcmp.eq.f32.partialorder %v295, %v309
        %vm313 = vcmp.eq.f32.partialorder %v296, %v309
        %v314 = vsel %vm310, %v195, 16
        %v315 = vsel %vm311, %v196, 16
        %v316 = vsel %vm312, %v197, 16
        %v317 = vsel %vm313, %v198, 16
        %v318 = vsel %vm246, %v314, 2147483647
        %v319 = vsel %vm246, %v315, 2147483647
        %v320 = vsel %vm246, %v316, 2147483647
        %v321 = vsel %vm246, %v317, 2147483647
        %vm322 = vcmp.lt.s32.totalorder %v318, %v319
        %v323 = vsel %vm322, %v318, %v319
        %vm324 = vcmp.lt.s32.totalorder %v320, %v321
        %v325 = vsel %vm324, %v320, %v321
        %vm326 = vcmp.lt.s32.totalorder %v323, %v325
        %v327 = vsel %vm326, %v323, %v325
        %v328 = vrot.slane %v327, 4
        %vm329 = vcmp.lt.s32.totalorder %v327, %v328
        %v330 = vsel %vm329, %v327, %v328
        %v331 = vrot.slane %v330, 2
        %vm332 = vcmp.lt.s32.totalorder %v330, %v331
        %v333 = vsel %vm332, %v330, %v331
        %v334 = vrot.slane %v333, 1
        %vm335 = vcmp.lt.s32.totalorder %v333, %v334
        %v336 = vsel %vm335, %v333, %v334
        %337 = vst.msk [vmem:[%s171 + $0x1] sm:$0x1] %vm287, %v336
        %vm338 = vcmp.eq.s32.totalorder %v195, %v336
        %vm339 = vcmp.eq.s32.totalorder %v196, %v336
        %vm340 = vcmp.eq.s32.totalorder %v197, %v336
        %vm341 = vcmp.eq.s32.totalorder %v198, %v336
        %v342 = vsel %vm338, inf, %v293
        %v343 = vsel %vm339, inf, %v294
        %v344 = vsel %vm340, inf, %v295
        %v345 = vsel %vm341, inf, %v296
        %v346 = vsel %vm246, %v342, inf
        %v347 = vsel %vm246, %v343, inf
        %v348 = vsel %vm246, %v344, inf
        %v349 = vsel %vm246, %v345, inf
        %v350 = vmin.f32 %v346, %v347
        %v351 = vmin.f32 %v348, %v349
        %v352 = vmin.f32 %v350, %v351
        %v353 = vrot.slane %v352, 4
        %v354 = vmin.f32 %v352, %v353
        %v355 = vrot.slane %v354, 2
        %v356 = vmin.f32 %v354, %v355
        %v357 = vrot.slane %v356, 1
        %v358 = vmin.f32 %v356, %v357
        %vm359 = vcmp.eq.f32.partialorder %v342, %v358
        %vm360 = vcmp.eq.f32.partialorder %v343, %v358
        %vm361 = vcmp.eq.f32.partialorder %v344, %v358
        %vm362 = vcmp.eq.f32.partialorder %v345, %v358
        %v363 = vsel %vm359, %v195, 16
        %v364 = vsel %vm360, %v196, 16
        %v365 = vsel %vm361, %v197, 16
        %v366 = vsel %vm362, %v198, 16
        %v367 = vsel %vm246, %v363, 2147483647
        %v368 = vsel %vm246, %v364, 2147483647
        %v369 = vsel %vm246, %v365, 2147483647
        %v370 = vsel %vm246, %v366, 2147483647
        %vm371 = vcmp.lt.s32.totalorder %v367, %v368
        %v372 = vsel %vm371, %v367, %v368
        %vm373 = vcmp.lt.s32.totalorder %v369, %v370
        %v374 = vsel %vm373, %v369, %v370
        %vm375 = vcmp.lt.s32.totalorder %v372, %v374
        %v376 = vsel %vm375, %v372, %v374
        %v377 = vrot.slane %v376, 4
        %vm378 = vcmp.lt.s32.totalorder %v376, %v377
        %v379 = vsel %vm378, %v376, %v377
        %v380 = vrot.slane %v379, 2
        %vm381 = vcmp.lt.s32.totalorder %v379, %v380
        %v382 = vsel %vm381, %v379, %v380
        %v383 = vrot.slane %v382, 1
        %vm384 = vcmp.lt.s32.totalorder %v382, %v383
        %v385 = vsel %vm384, %v382, %v383
        %386 = vst.msk [vmem:[%s171 + $0x2] sm:$0x1] %vm287, %v385
        %vm387 = vcmp.eq.s32.totalorder %v195, %v385
        %vm388 = vcmp.eq.s32.totalorder %v196, %v385
        %vm389 = vcmp.eq.s32.totalorder %v197, %v385
        %vm390 = vcmp.eq.s32.totalorder %v198, %v385
        %v391 = vsel %vm387, inf, %v342
        %v392 = vsel %vm388, inf, %v343
        %v393 = vsel %vm389, inf, %v344
        %v394 = vsel %vm390, inf, %v345
        %v395 = vsel %vm246, %v391, inf
        %v396 = vsel %vm246, %v392, inf
        %v397 = vsel %vm246, %v393, inf
        %v398 = vsel %vm246, %v394, inf
        %v399 = vmin.f32 %v395, %v396
        %v400 = vmin.f32 %v397, %v398
        %v401 = vmin.f32 %v399, %v400
        %v402 = vrot.slane %v401, 4
        %v403 = vmin.f32 %v401, %v402
        %v404 = vrot.slane %v403, 2
        %v405 = vmin.f32 %v403, %v404
        %v406 = vrot.slane %v405, 1
        %v407 = vmin.f32 %v405, %v406
        %vm408 = vcmp.eq.f32.partialorder %v391, %v407
        %vm409 = vcmp.eq.f32.partialorder %v392, %v407
        %vm410 = vcmp.eq.f32.partialorder %v393, %v407
        %vm411 = vcmp.eq.f32.partialorder %v394, %v407
        %v412 = vsel %vm408, %v195, 16
        %v413 = vsel %vm409, %v196, 16
        %v414 = vsel %vm410, %v197, 16
        %v415 = vsel %vm411, %v198, 16
        %v416 = vsel %vm246, %v412, 2147483647
        %v417 = vsel %vm246, %v413, 2147483647
        %v418 = vsel %vm246, %v414, 2147483647
        %v419 = vsel %vm246, %v415, 2147483647
        %vm420 = vcmp.lt.s32.totalorder %v416, %v417
        %v421 = vsel %vm420, %v416, %v417
        %vm422 = vcmp.lt.s32.totalorder %v418, %v419
        %v423 = vsel %vm422, %v418, %v419
        %vm424 = vcmp.lt.s32.totalorder %v421, %v423
        %v425 = vsel %vm424, %v421, %v423
        %v426 = vrot.slane %v425, 4
        %vm427 = vcmp.lt.s32.totalorder %v425, %v426
        %v428 = vsel %vm427, %v425, %v426
        %v429 = vrot.slane %v428, 2
        %vm430 = vcmp.lt.s32.totalorder %v428, %v429
        %v431 = vsel %vm430, %v428, %v429
        %v432 = vrot.slane %v431, 1
        %vm433 = vcmp.lt.s32.totalorder %v431, %v432
        %v434 = vsel %vm433, %v431, %v432
        %435 = vst.msk [vmem:[%s171 + $0x3] sm:$0x1] %vm287, %v434
        %s436 = sand.u32 %s92, 1
        %s437 = scalar_lea.sflag [#allocation3], %s436
        %s438 = sand.u32 %s92, 1
        %s439 = smul.addr %s438, 4
        %s440 = scalar_lea.vmem [#allocation2], %s439
        // Predicated region
        $region36: #{tpu_custom_call.1} parent=27 // pred_check
          %p441 = pneg %p102
        $region37: #{tpu_custom_call.1} parent=27 // pred_check_branch
          %443 = sbr.rel (%p441) target = $region39
        $region38: #{tpu_custom_call.1} parent=27 // pred_region
          %s445 = ssub.s32 64, 64
          %446 = vsyncadd %s437, %s445
          %s447 = sadd.s32 %s21, %s20
          %s448 = smul.addr %s447, 64
          %s449 = scalar_lea.hbm %s2, %s448
          %s451 = sshll.u32 %s440, 4
          %s452 = int_to_ptr.vmem [resolvable:$true] %s451
          %454 = dma.vmem_to_hbm [thread:$0]  %s452, 64, %s449, %s437
        $region39: #{tpu_custom_call.1} parent=27 // pred_fallthru
          _
      $region28: #{tpu_custom_call.1} parent=5 // pred_fallthru
        _
      %p455 = scmp.le.s32.totalorder 2, %s11
      // Predicated region
      $region40: #{tpu_custom_call.1} parent=5 // pred_check
        %p456 = pneg %p455
      $region41: #{tpu_custom_call.1} parent=5 // pred_check_branch
        %458 = sbr.rel (%p456) target = $region43
      $region42: #{tpu_custom_call.1} parent=5 // pred_region
        %s459 = ssub.s32 %s11, 2
        // Predicated region
        $region44: #{tpu_custom_call.1} parent=42 // pred_check
          %p460 = pneg %p108
        $region45: #{tpu_custom_call.1} parent=42 // pred_check_branch
          %462 = sbr.rel (%p460) target = $region47
        $region46: #{tpu_custom_call.1} parent=42 // pred_region
          %s463 = sand.u32 %s93, 1
          %s464 = scalar_lea.sflag [#allocation3], %s463
          %s465 = sand.u32 %s93, 1
          %s466 = smul.addr %s465, 4
          %s467 = scalar_lea.vmem [#allocation2], %s466
          %468 = dma.done %s464, 64
        $region47: #{tpu_custom_call.1} parent=42 // pred_fallthru
          _
      $region43: #{tpu_custom_call.1} parent=5 // pred_fallthru
        _
    $region6: #{tpu_custom_call.1} parent=1 // loop_footer
      %s15 = sadd.s32 1, %s11
    $region7: #{tpu_custom_call.1} parent=1 // loop_footer_branch
      %10 = sbr.rel target = $region3
    $region8: #{tpu_custom_call.1} parent=1 // loop_exit
      _
    %469 = vsyncpa [#allocation3], 1
    %s470 = scalar_lea.sflag [#allocation3], 1
    %471 = vsyncpa %s470, 1

</llo_original>
